<compile_context>
chip_gen: v7x
topology: tpu7x:2x2x1
jax: 0.10.0
libtpu: 0.0.40
codegen_flags: <defaults>
</compile_context>

<pallas_src>
import functools
import math

import jax
import jax.numpy as jnp
from jax.experimental import pallas as pl
from jax.experimental.pallas import tpu as pltpu


# ---------------------------------------------------------------------------
# Kernel: one tile of packed rows; rows = S samples each, lanes = S*C*L.
# Entire forward = one MXU matmul + bias + ReLU.
# ---------------------------------------------------------------------------
def _spatio_kernel(x_ref, k_ref, d_ref, out_ref):
    u = jnp.dot(x_ref[...], k_ref[...], preferred_element_type=jnp.float32)
    out_ref[...] = jnp.maximum(u + d_ref[...], 0.0).astype(out_ref.dtype)


# ---------------------------------------------------------------------------
# Weight preprocessing (weight_norm folding, affine-chain folding)
# ---------------------------------------------------------------------------
def _round_up(a, b):
    return -(-a // b) * b


def _wn_weight(v, g):
    """torch weight_norm (dim=0): w = g * v / ||v||, norm over all dims but 0."""
    axes = tuple(range(1, v.ndim))
    norm = jnp.sqrt(jnp.sum(v * v, axis=axes, keepdims=True))
    return g * v / norm


def _effective_weights(params):
    Wa = _wn_weight(params['a_v'], params['a_g'])[:, :, 0]   # (128, C)
    Wc = _wn_weight(params['c_v'], params['c_g'])            # (128, L)
    We = _wn_weight(params['e_v'], params['e_g'])[:, :, 0]   # (C, 128)
    Wf = _wn_weight(params['f_v'], params['f_g'])            # (L, 128)
    return (Wa, params['a_b'], Wc, params['c_b'],
            We, params['e_b'], Wf, params['f_b'])


# ---------------------------------------------------------------------------
# Wrapper
# ---------------------------------------------------------------------------
def spatio_block_forward(x, params, *, tile_rows=2048):
    """x: (N, n_inputs, n_channels) f32 -> (N, n_inputs, n_channels) f32.

    tile_rows must be a multiple of 8 (it is only used when the packed-row
    count exceeds it; otherwise a single full-extent block is used).
    """
    N, C, L = x.shape
    f32 = jnp.float32
    Wa, ba, Wc, bc, We, be, Wf, bf = [
        a.astype(f32) for a in _effective_weights(params)]

    # ---- one-time exact constant folding (the chain is affine) -----------
    G = We @ Wa                                     # (C, C)  left operator
    M = Wc.T @ Wf.T                                 # (L, L)  right operator
    d1 = jnp.broadcast_to(ba[:, None], (128, L))    # net_a(0)
    d2 = d1 @ Wc.T + bc[None, :]                    # net_c
    d3 = We @ d2 + be[:, None]                      # net_e
    D = d3 @ Wf.T + bf[None, :]                     # net_f   -> (C, L)

    # ---- lane packing: S flattened samples per 128-multiple-wide row -----
    P = C * L
    S = 128 // math.gcd(P, 128)                     # samples per packed row
    LW = S * P                                      # lane width (mult of 128)

    K = jnp.kron(G.T, M)                            # (P, P): vec(GxM) = vec(x)@K
    Kb = jnp.kron(jnp.eye(S, dtype=f32), K)         # (LW, LW) blockdiag
    d_row = jnp.tile(D.reshape(-1), S).reshape(1, LW)

    # ---- x slab: pure reshape (bitcast); pad only if N % S != 0 ----------
    xp = x.astype(f32)
    n_pad = _round_up(N, S)
    if n_pad != N:
        xp = jnp.pad(xp, ((0, n_pad - N), (0, 0), (0, 0)))
    rows = n_pad // S
    x2 = xp.reshape(rows, LW)                       # no data movement

    tr = rows if rows <= tile_rows else tile_rows   # full-dim or 8-multiple
    grid = (pl.cdiv(rows, tr),)                     # ragged last tile masked

    out2d = pl.pallas_call(
        _spatio_kernel,
        out_shape=jax.ShapeDtypeStruct((rows, LW), f32),
        grid=grid,
        in_specs=[pl.BlockSpec((tr, LW), lambda n: (n, 0)),
                  pl.BlockSpec((LW, LW), lambda n: (0, 0)),   # resident const
                  pl.BlockSpec((1, LW), lambda n: (0, 0))],   # resident const
        out_specs=pl.BlockSpec((tr, LW), lambda n: (n, 0)),
        compiler_params=pltpu.CompilerParams(
            dimension_semantics=("parallel",)),
    )(x2, Kb, d_row)

    return out2d.reshape(n_pad, C, L)[:N]


# ---------------------------------------------------------------------------
# Parameters & literal layer-by-layer reference
# ---------------------------------------------------------------------------
def init_params(key, n_inputs, n_channels, *, std=0.1):
    C, L = n_inputs, n_channels
    shapes = {
        'a_v': (128, C, 1), 'a_b': (128,),
        'c_v': (128, L),    'c_b': (128,),
        'e_v': (C, 128, 1), 'e_b': (C,),
        'f_v': (L, 128),    'f_b': (L,),
    }
    ks = jax.random.split(key, len(shapes))
    p = {k: std * jax.random.normal(kk, s, jnp.float32)
         for (k, s), kk in zip(shapes.items(), ks)}
    # weight_norm init: g = ||v|| (norm over all dims except 0)
    for n in ('a', 'c', 'e', 'f'):
        v = p[n + '_v']
        axes = tuple(range(1, v.ndim))
        p[n + '_g'] = jnp.sqrt(jnp.sum(v * v, axis=axes, keepdims=True))
    return p


def reference_forward(x, params):
    Wa, ba, Wc, bc, We, be, Wf, bf = _effective_weights(params)
    y = jnp.einsum('oc,ncl->nol', Wa, x) + ba[None, :, None]     # net_a
    y = y @ Wc.T + bc                                            # net_c
    y = jnp.einsum('po,nol->npl', We, y) + be[None, :, None]     # net_e
    y = y @ Wf.T + bf                                            # net_f
    return jax.nn.relu(y)                                        # relu


# ---------------------------------------------------------------------------
if __name__ == "__main__":
    key = jax.random.PRNGKey(0)
    kx, kp = jax.random.split(key)

    batch, n_inputs, n_channels = 2, 4, 16       # x: (N, n_inputs, n_channels)
    x = jax.random.normal(kx, (batch, n_inputs, n_channels), jnp.float32)
    params = init_params(kp, n_inputs, n_channels)

    ref = reference_forward(x, params)
    fwd = jax.jit(spatio_block_forward)
    out = jax.block_until_ready(fwd(x, params))
    assert out.shape == (batch, n_inputs, n_channels), out.shape
    assert jnp.allclose(out, ref, rtol=1e-4, atol=1e-5), \
        float(jnp.max(jnp.abs(out - ref)))

    # Larger, odd batch: exercises S-padding, multi-step grid and the ragged
    # last tile (handled by Pallas boundary masking, no wrapper-side padding
    # of the packed rows).
    x_big = jax.random.normal(jax.random.PRNGKey(1),
                              (37, n_inputs, n_channels), jnp.float32)
    ref_big = reference_forward(x_big, params)
    fwd_small_tiles = jax.jit(
        functools.partial(spatio_block_forward, tile_rows=8))
    out_big = jax.block_until_ready(fwd_small_tiles(x_big, params))
    assert out_big.shape == x_big.shape, out_big.shape
    assert jnp.allclose(out_big, ref_big, rtol=1e-4, atol=1e-5), \
        float(jnp.max(jnp.abs(out_big - ref_big)))

    print("KERNEL_OK")
</pallas_src>

<mosaic_0001>
module attributes {stable_mosaic.version = 11 : i64} {
  func.func @_spatio_kernel(%arg0: i32, %arg1: memref<1x128xf32, #tpu.memory_space<vmem>>, %arg2: memref<128x128xf32, #tpu.memory_space<vmem>>, %arg3: memref<1x128xf32, #tpu.memory_space<vmem>>, %arg4: memref<1x128xf32, #tpu.memory_space<vmem>>) attributes {dimension_semantics = [#tpu.dimension_semantics<parallel>], iteration_bounds = array<i64: 1>, scalar_prefetch = 0 : i64, scratch_operands = 0 : i64, tpu.core_type = #tpu.core_type<tc>, window_params = [{transform_indices = @transform_0, window_bounds = array<i64: 1, 128>}, {pipeline_mode = #tpu.pipeline_mode<synchronous>, transform_indices = @transform_1, window_bounds = array<i64: 128, 128>}, {pipeline_mode = #tpu.pipeline_mode<synchronous>, transform_indices = @transform_2, window_bounds = array<i64: 1, 128>}, {transform_indices = @transform_3, window_bounds = array<i64: 1, 128>}]} {
    %c0 = arith.constant 0 : index
    %c0_0 = arith.constant 0 : index
    %0 = vector.load %arg1[%c0, %c0_0] : memref<1x128xf32, #tpu.memory_space<vmem>>, vector<1x128xf32>
    %c0_1 = arith.constant 0 : index
    %c0_2 = arith.constant 0 : index
    %1 = vector.load %arg2[%c0_1, %c0_2] : memref<128x128xf32, #tpu.memory_space<vmem>>, vector<128x128xf32>
    %cst = arith.constant dense<0.000000e+00> : vector<1x128xf32>
    %2 = tpu.matmul %0, %1, %cst {dimension_numbers = #tpu.dot_dimension_numbers<[1], [0], [0], [1], [0, 0, 1, 1], [], []>} : vector<1x128xf32>, vector<128x128xf32>, vector<1x128xf32> -> vector<1x128xf32>
    %c0_3 = arith.constant 0 : index
    %c0_4 = arith.constant 0 : index
    %3 = vector.load %arg3[%c0_3, %c0_4] : memref<1x128xf32, #tpu.memory_space<vmem>>, vector<1x128xf32>
    %4 = arith.addf %2, %3 : vector<1x128xf32>
    %cst_5 = arith.constant 0.000000e+00 : f32
    %5 = vector.broadcast %cst_5 : f32 to vector<1x128xf32>
    %6 = arith.maximumf %4, %5 : vector<1x128xf32>
    %c0_6 = arith.constant 0 : index
    %c0_7 = arith.constant 0 : index
    %7 = vector.load %arg4[%c0_6, %c0_7] : memref<1x128xf32, #tpu.memory_space<vmem>>, vector<1x128xf32>
    tpu.vector_store %arg4[%c0_6, %c0_7], %6 {strides = array<i32>} : memref<1x128xf32, #tpu.memory_space<vmem>>, vector<1x128xf32>,
    return
  }
  func.func @transform_0(%arg0: i32) -> (i32, i32) {
    %c0_i32 = arith.constant 0 : i32
    %c0_i32_0 = arith.constant 0 : i32
    return %arg0, %c0_i32 : i32, i32
  }
  func.func @transform_1(%arg0: i32) -> (i32, i32) {
    %c0_i32 = arith.constant 0 : i32
    %c0_i32_0 = arith.constant 0 : i32
    %c0_i32_1 = arith.constant 0 : i32
    return %c0_i32, %c0_i32_0 : i32, i32
  }
  func.func @transform_2(%arg0: i32) -> (i32, i32) {
    %c0_i32 = arith.constant 0 : i32
    %c0_i32_0 = arith.constant 0 : i32
    %c0_i32_1 = arith.constant 0 : i32
    return %c0_i32, %c0_i32_0 : i32, i32
  }
  func.func @transform_3(%arg0: i32) -> (i32, i32) {
    %c0_i32 = arith.constant 0 : i32
    %c0_i32_0 = arith.constant 0 : i32
    return %arg0, %c0_i32 : i32, i32
  }
}

</mosaic_0001>

<llo_original>
// kernel: tile.5
$region0: #{tile.5}
  %s0 = inlined_call_operand.vmem [shape: f32[4,16], index: 0, kind: input, shape index: {}]
  %s1 = inlined_call_operand.vmem [shape: f32[64], index: 1, kind: output, shape index: {}]
  $region1: #{tile.5} parent=0
    #allocation0 [shape = 'u8[4096]{0}', space=vmem, size = 0x1000, scoped, tag = 'scoped mem for output reshape']
    #allocation1 [shape = 'u8[4096]{0}', space=vmem, size = 0x1000, scoped, tag = 'scoped mem for input reshape']
    %s3 = sshllo.u32 0, 4
    %v4 = vld [vmem:[%s0] sm:%s3]
    %5 = vst [vmem:[#allocation1] sm:%s3] %v4
    %v6 = vld [vmem:[#allocation1] sm:$0x1]
    %vm7 = vcmask 130048
    %8 = vst.msk [vmem:[#allocation0] sm:$0x1] %vm7, %v6
    %s9 = scalar_lea.vmem [#allocation1], 3
    %v10 = vld [vmem:[%s9] sm:$0x1]
    %11 = vrot.lane.b32.xlu0 %v10, 48
    %v12 = vpop.permute.xlu0 %11
    %vm13 = vcmask 523648
    %14 = vst.msk [vmem:[#allocation0] sm:$0x1] %vm13, %v12
    %s15 = scalar_lea.vmem [#allocation1], 2
    %v16 = vld [vmem:[%s15] sm:$0x1]
    %17 = vrot.lane.b32.xlu0 %v16, 32
    %v18 = vpop.permute.xlu0 %17
    %vm19 = vcmask 392448
    %20 = vst.msk [vmem:[#allocation0] sm:$0x1] %vm19, %v18
    %s21 = scalar_lea.vmem [#allocation1], 1
    %v22 = vld [vmem:[%s21] sm:$0x1]
    %23 = vrot.lane.b32.xlu0 %v22, 16
    %v24 = vpop.permute.xlu0 %23
    %vm25 = vcmask 261248
    %26 = vst.msk [vmem:[#allocation0] sm:$0x1] %vm25, %v24
    %s28 = sshllo.u32 0, 1
    %v30 = vld [vmem:[#allocation0] sm:%s28]
    %s31 = sshllo.u32 0, 1
    %32 = vst [vmem:[%s1] sm:%s31] %v30

// kernel: tile.6
$region0: #{tile.6}
  #allocation0 [shape = 's32[1]{0}', space=sflag, size = 0x4, scoped, tag = 'scoped memory for tile.6']
  %s0 = inlined_call_operand.vmem [shape: f32[64], index: 0, kind: input, shape index: {}]
  %s1 = inlined_call_operand.vmem [shape: f32[2,64], index: 1, kind: output, shape index: {}]
  // Predicated region
  $region2: #{tile.6} parent=0 // pred_check
    _
  $region3: #{tile.6} parent=0 // pred_check_branch
    %3 = sbr.rel (0) target = $region5
  $region4: #{tile.6} parent=0 // pred_region
    _
  $region5: #{tile.6} parent=0 // pred_fallthru
    _
  %v4 = vld [vmem:[%s0] ss:$0 sm:$0xff]
  %5 = vst [vmem:[%s1] sm:$0x3] %v4

// kernel: tile.7
$region0: #{tile.7}
  %s0 = inlined_call_operand.vmem [shape: f32[2,64], index: 0, kind: input, shape index: {}]
  %s1 = inlined_call_operand.vmem [shape: f32[1,128], index: 1, kind: output, shape index: {}]
  $region1: #{tile.7} parent=0
    #allocation0 [shape = 'u8[4096]{0}', space=vmem, size = 0x1000, scoped, tag = 'scoped mem for output reshape']
    #allocation1 [shape = 'u8[4096]{0}', space=vmem, size = 0x1000, scoped, tag = 'scoped mem for input reshape']
    %s3 = sshllo.u32 0, 2
    %v4 = vld [vmem:[%s0] sm:%s3]
    %5 = vst [vmem:[#allocation1] sm:%s3] %v4
    %v6 = vld [vmem:[#allocation1] sm:$0x1]
    %vm7 = vcmask 523264
    %8 = vst.msk [vmem:[#allocation0] sm:$0x1] %vm7, %v6
    %s9 = scalar_lea.vmem [#allocation1], 1
    %v10 = vld [vmem:[%s9] sm:$0x1]
    %11 = vrot.lane.b32.xlu0 %v10, 64
    %v12 = vpop.permute.xlu0 %11
    %vm13 = vcmask 1048064
    %14 = vst.msk [vmem:[#allocation0] sm:$0x1] %vm13, %v12
    %s16 = sshllo.u32 0, 1
    %v18 = vld [vmem:[#allocation0] sm:%s16]
    %s19 = sshllo.u32 0, 1
    %20 = vst [vmem:[%s1] sm:%s19] %v18

// kernel: spatio_block_forward.1
$region0: #{spatio_block_forward.1}
  #allocation0 [shape = 'u32[]', space=smem, size = 0x4, offset = 0x4, fixed_abs, tag = 'smem constant byte address 0x4 - core index']
  #allocation1 [shape = 'u32[144,128]{1,0:T(1,128)}', space=vmem, size = 0x12000, scoped, tag = 'internal scratch']
  %s0 = inlined_call_operand.vmem [shape: f32[1,128], index: 0, kind: input, shape index: {}]
  %s1 = inlined_call_operand.vmem [shape: f32[128,128], index: 1, kind: input, shape index: {}]
  %s2 = inlined_call_operand.vmem [shape: f32[1,128], index: 2, kind: input, shape index: {}]
  %s3 = inlined_call_operand.vmem [shape: f32[1,128], index: 3, kind: output, shape index: {}]
  %s4 = sld [smem:[#allocation0]]
  $region22: #{spatio_block_forward.1} parent=0
    _
  %s6 = ssub.s32 1, %s4
  %s7 = scalar_select 0, %s6, %s4
  // Predicated region
  $region2: #{spatio_block_forward.1} parent=0 // pred_check
    _
  $region3: #{spatio_block_forward.1} parent=0 // pred_check_branch
    %9 = sbr.rel (0) target = $region5
  $region4: #{spatio_block_forward.1} parent=0 // pred_region
    _
  $region5: #{spatio_block_forward.1} parent=0 // pred_fallthru
    _
  // Predicated region
  $region6: #{spatio_block_forward.1} parent=0 // pred_check
    _
  $region7: #{spatio_block_forward.1} parent=0 // pred_check_branch
    %11 = sbr.rel (0) target = $region9
  $region8: #{spatio_block_forward.1} parent=0 // pred_region
    _
  $region9: #{spatio_block_forward.1} parent=0 // pred_fallthru
    _
  // Predicated region
  $region10: #{spatio_block_forward.1} parent=0 // pred_check
    _
  $region11: #{spatio_block_forward.1} parent=0 // pred_check_branch
    %13 = sbr.rel (0) target = $region13
  $region12: #{spatio_block_forward.1} parent=0 // pred_region
    _
  $region13: #{spatio_block_forward.1} parent=0 // pred_fallthru
    _
  %v14 = vld [vmem:[%s0] sm:$0x1]
  %v15 = vld [vmem:[%s1] sm:$0xff]
  %v16 = vld [vmem:[%s1 + $0x8] sm:$0xff]
  %v17 = vld [vmem:[%s1 + $0x10] sm:$0xff]
  %v18 = vld [vmem:[%s1 + $0x18] sm:$0xff]
  %v19 = vld [vmem:[%s1 + $0x20] sm:$0xff]
  %v20 = vld [vmem:[%s1 + $0x28] sm:$0xff]
  %v21 = vld [vmem:[%s1 + $0x30] sm:$0xff]
  %v22 = vld [vmem:[%s1 + $0x38] sm:$0xff]
  %v23 = vld [vmem:[%s1 + $0x40] sm:$0xff]
  %v24 = vld [vmem:[%s1 + $0x48] sm:$0xff]
  %v25 = vld [vmem:[%s1 + $0x50] sm:$0xff]
  %v26 = vld [vmem:[%s1 + $0x58] sm:$0xff]
  %v27 = vld [vmem:[%s1 + $0x60] sm:$0xff]
  %v28 = vld [vmem:[%s1 + $0x68] sm:$0xff]
  %v29 = vld [vmem:[%s1 + $0x70] sm:$0xff]
  %v30 = vld [vmem:[%s1 + $0x78] sm:$0xff]
  %v31 = vld [vmem:[%s2] sm:$0x1]
  %32 = vmatprep.subr.mxu0 0.0
  %33 = vmatpush1.msra.mxu0 %v15
  %34 = vmatprep.subr.mxu0 0.0
  %35 = vmatpush1.msra.mxu0 %v16
  %36 = vmatprep.subr.mxu0 0.0
  %37 = vmatpush1.msra.mxu0 %v17
  %38 = vmatprep.subr.mxu0 0.0
  %39 = vmatpush1.msra.mxu0 %v18
  %40 = vmatprep.subr.mxu0 0.0
  %41 = vmatpush1.msra.mxu0 %v19
  %42 = vmatprep.subr.mxu0 0.0
  %43 = vmatpush1.msra.mxu0 %v20
  %44 = vmatprep.subr.mxu0 0.0
  %45 = vmatpush1.msra.mxu0 %v21
  %46 = vmatprep.subr.mxu0 0.0
  %47 = vmatpush1.msra.mxu0 %v22
  %48 = vmatprep.subr.mxu0 0.0
  %49 = vmatpush1.msra.mxu0 %v23
  %50 = vmatprep.subr.mxu0 0.0
  %51 = vmatpush1.msra.mxu0 %v24
  %52 = vmatprep.subr.mxu0 0.0
  %53 = vmatpush1.msra.mxu0 %v25
  %54 = vmatprep.subr.mxu0 0.0
  %55 = vmatpush1.msra.mxu0 %v26
  %56 = vmatprep.subr.mxu0 0.0
  %57 = vmatpush1.msra.mxu0 %v27
  %58 = vmatprep.subr.mxu0 0.0
  %59 = vmatpush1.msra.mxu0 %v28
  %60 = vmatprep.subr.mxu0 0.0
  %61 = vmatpush1.msra.mxu0 %v29
  %62 = vmatprep.subr.mxu0 0.0
  %63 = vmatpush1.msra.mxu0 %v30
  %64 = vmatprep.subr.mxu0 0.0
  %65 = vmatpush1.msra.mxu0 0.0
  %66 = vmatprep.subr.mxu0 0.0
  %67 = vmatpush1.msra.mxu0 0.0
  %68 = vmatprep.subr.mxu0 0.0
  %69 = vmatpush1.msra.mxu0 0.0
  %70 = vmatprep.subr.mxu0 0.0
  %71 = vmatpush1.msra.mxu0 0.0
  %72 = vmatprep.subr.mxu0 0.0
  %73 = vmatpush1.msra.mxu0 0.0
  %74 = vmatprep.subr.mxu0 0.0
  %75 = vmatpush1.msra.mxu0 0.0
  %76 = vmatprep.subr.mxu0 0.0
  %77 = vmatpush1.msra.mxu0 0.0
  %78 = vmatprep.subr.mxu0 0.0
  %79 = vmatpush1.msra.mxu0 0.0
  %80 = vmatprep.subr.mxu0 0.0
  %81 = vmatpush1.msra.mxu0 0.0
  %82 = vmatprep.subr.mxu0 0.0
  %83 = vmatpush1.msra.mxu0 0.0
  %84 = vmatprep.subr.mxu0 0.0
  %85 = vmatpush1.msra.mxu0 0.0
  %86 = vmatprep.subr.mxu0 0.0
  %87 = vmatpush1.msra.mxu0 0.0
  %88 = vmatprep.subr.mxu0 0.0
  %89 = vmatpush1.msra.mxu0 0.0
  %90 = vmatprep.subr.mxu0 0.0
  %91 = vmatpush1.msra.mxu0 0.0
  %92 = vmatprep.subr.mxu0 0.0
  %93 = vmatpush1.msra.mxu0 0.0
  %94 = vmatprep.subr.mxu0 0.0
  %95 = vmatpush1.msra.mxu0 0.0
  %96 = vmatprep.mubr.f32.mxu0 0.0
  %97 = vmatmul.mubr.f32.gmra.mrb[0].mxu0 %v14
  %v98 = vpop.f32.mrb[0].mxu0
  %v99 = vadd.f32 %v31, %v98
  %v100 = vpop.f32.mrb[0].mxu0
  %101 = vdwg.mxu0
  %v102 = vmax.f32 %v99, 0.0
  %103 = vst [vmem:[%s3] sm:$0x1] %v102
  // Predicated region
  $region14: #{spatio_block_forward.1} parent=0 // pred_check
    _
  $region15: #{spatio_block_forward.1} parent=0 // pred_check_branch
    %105 = sbr.rel (0) target = $region17
  $region16: #{spatio_block_forward.1} parent=0 // pred_region
    _
  $region17: #{spatio_block_forward.1} parent=0 // pred_fallthru
    _
  // Predicated region
  $region18: #{spatio_block_forward.1} parent=0 // pred_check
    _
  $region19: #{spatio_block_forward.1} parent=0 // pred_check_branch
    %107 = sbr.rel (0) target = $region21
  $region20: #{spatio_block_forward.1} parent=0 // pred_region
    _
  $region21: #{spatio_block_forward.1} parent=0 // pred_fallthru
    _

</llo_original>
